<compile_context>
chip_gen: v6e
topology: v6e:2x2x1
jax: 0.10.0
libtpu: 0.0.40
codegen_flags: <defaults>
</compile_context>

<pallas_src>
import functools

import jax
import jax.numpy as jnp
import numpy as np
from jax.experimental import pallas as pl
from jax.experimental.pallas import tpu as pltpu


def _chemp_kernel(z_ref, jT_ref, jdiag_ref, sig_ref, delta_ref, w_ref, b_ref,
                  p_ref, jsq_ref, t2_ref, t3h_ref, *, length, input_size):
    L, N = length, input_size
    layer = pl.program_id(1)

    z = z_ref[0]            # (1, N)
    j_diag = jdiag_ref[0]   # (1, N)  == diag(J) (precomputed in the wrapper)
    sig_v = sig_ref[0]      # scalar sigma_square_v (SMEM)

    # symbols = linspace(1-L, L-1, L)  (uniform step of 2), kept as (L, 1)
    sym = (jax.lax.broadcasted_iota(jnp.int32, (L, 1), 0).astype(jnp.float32)
           * 2.0 + (1.0 - L))
    sym_sq = sym * sym

    # Per-batch, layer-invariant precompute: done once at layer == 0 and cached
    # in VMEM scratch (the scratch persists across the layer grid axis).
    @pl.when(layer == 0)
    def _init():
        p_ref[0] = jnp.full((L, N), 1.0 / L, dtype=jnp.float32)   # initial message
        jT = jT_ref[0]                                            # (N, N) == J^T
        jsq_ref[...] = jT * jT                                    # (J^T)^2
        s0 = jnp.float32(1.0 - L)                                 # symbols[0]
        t2_ref[...] = j_diag * (sym + s0)                         # J_ii*(s_k+s_1)
        t3h_ref[...] = (0.5 * j_diag) * (sym - s0)                # 0.5*J_ii*(s_k-s_1)

    p = p_ref[0]            # (L, N)  message carried across layers
    w = w_ref[0]            # (L, N)  this layer's weight
    b = b_ref[0]            # (L, N)  this layer's bias
    delta = delta_ref[0]    # (1, N)  this layer's delta

    expectation = jnp.sum(p * sym, axis=0, keepdims=True)              # (1, N)
    var = (jnp.sum(p * sym_sq, axis=0, keepdims=True)
           - expectation * expectation)                                # (1, N)

    # mu_i = sum_k J[i,k] E_k - E_i J_ii      -> (1,N) @ (N,N) MXU dot
    mu = (jnp.dot(expectation, jT_ref[0], preferred_element_type=jnp.float32)
          - expectation * j_diag)                                      # (1, N)
    # sigma_i^2 = sum_k J[i,k]^2 Var_k + sigma_v - Var_i J_ii^2
    sigma_sq = (jnp.dot(var, jsq_ref[...], preferred_element_type=jnp.float32)
                + sig_v - var * (j_diag * j_diag))                     # (1, N)
    inv_sigma = 1.0 / sigma_sq                                         # (1, N)

    temp1 = 2.0 * (z - mu)                                             # (1, N)
    # L_i(s_k) = [(2(z_i-mu_i)-J_ii(s_k+s_1)) * J_ii(s_k-s_1)] / (2 sigma_i^2)
    likelihood = (temp1 - t2_ref[...]) * t3h_ref[...] * inv_sigma      # (L, N)

    lt = likelihood * w + b
    log_max = jnp.max(lt, axis=0, keepdims=True)                       # (1, N)
    e = jnp.exp(lt - log_max)                                          # softmax over L
    p_tilde = e * (1.0 / jnp.sum(e, axis=0, keepdims=True))
    p_ref[0] = (p_tilde * (1.0 - delta) + p * delta).astype(p_ref.dtype)


def chemp_forward(z, j_matrix, sigma_square_v, delta, w, b, *, length, n_layers):
    """z: (B, N); j_matrix: (B, N, N); delta: (n_layers, N); w, b: (n_layers, L, N)."""
    B, N = z.shape
    L = length

    z3 = z.reshape(B, 1, N).astype(jnp.float32)
    jT = jnp.swapaxes(j_matrix, -1, -2).astype(jnp.float32)             # pass J^T
    j_diag = jnp.diagonal(j_matrix, axis1=-2, axis2=-1)                 # (B, N)
    j_diag = j_diag.reshape(B, 1, N).astype(jnp.float32)
    sig = jnp.asarray([sigma_square_v], dtype=jnp.float32)              # SMEM scalar
    delta3 = delta.reshape(n_layers, 1, N).astype(jnp.float32)
    w = w.astype(jnp.float32)
    b = b.astype(jnp.float32)

    kernel = functools.partial(_chemp_kernel, length=L, input_size=N)

    return pl.pallas_call(
        kernel,
        out_shape=jax.ShapeDtypeStruct((B, L, N), jnp.float32),
        grid_spec=pltpu.PrefetchScalarGridSpec(
            num_scalar_prefetch=0,
            grid=(B, n_layers),                                         # layer axis innermost
            in_specs=[
                pl.BlockSpec((1, 1, N), lambda bi, li: (bi, 0, 0)),     # z
                pl.BlockSpec((1, N, N), lambda bi, li: (bi, 0, 0)),     # J^T (resident per batch)
                pl.BlockSpec((1, 1, N), lambda bi, li: (bi, 0, 0)),     # diag(J)
                pl.BlockSpec(memory_space=pltpu.MemorySpace.SMEM),      # sigma_square_v
                pl.BlockSpec((1, 1, N), lambda bi, li: (li, 0, 0)),     # delta   (per layer)
                pl.BlockSpec((1, L, N), lambda bi, li: (li, 0, 0)),     # w       (per layer)
                pl.BlockSpec((1, L, N), lambda bi, li: (li, 0, 0)),     # b       (per layer)
            ],
            # Same block index across the layer axis => p stays resident in VMEM
            # and acts as the carried message; written back when the batch changes.
            out_specs=pl.BlockSpec((1, L, N), lambda bi, li: (bi, 0, 0)),
            scratch_shapes=[
                pltpu.VMEM((N, N), jnp.float32),   # (J^T)^2
                pltpu.VMEM((L, N), jnp.float32),   # J_ii * (s + s0)
                pltpu.VMEM((L, N), jnp.float32),   # 0.5 * J_ii * (s - s0)
            ],
        ),
        compiler_params=pltpu.CompilerParams(
            dimension_semantics=("parallel", "arbitrary")),
    )(z3, jT, j_diag, sig, delta3, w, b)


def chemp_reference(z, j_matrix, sigma_square_v, delta, w, b, *, length, n_layers):
    """Pure-JAX reference mirroring the PyTorch forward (for validation)."""
    B, N = z.shape
    L = length
    symbols = jnp.linspace(1.0 - L, L - 1.0, L).astype(jnp.float32)     # (L,)
    j_diag = jnp.diagonal(j_matrix, axis1=-2, axis2=-1)                 # (B, N)
    p = jnp.ones((B, L, N), jnp.float32) / L
    for layer in range(n_layers):
        wl, bl, dl = w[layer], b[layer], delta[layer]
        expectation = jnp.einsum('ijk,j->ik', p, symbols)
        var = jnp.einsum('ijk,j->ik', p, symbols ** 2) - expectation ** 2
        mu = jnp.einsum('ijk,ik->ij', j_matrix, expectation) - expectation * j_diag
        sigma_sq = (jnp.einsum('ijk,ik->ij', j_matrix ** 2, var)
                    + sigma_square_v - var * j_diag ** 2)
        s_add = symbols + symbols[0]
        s_minor = symbols - symbols[0]
        temp1 = (2.0 * (z - mu))[:, None, :]
        temp2 = jnp.einsum('ij,k->ikj', j_diag, s_add)
        temp3 = jnp.einsum('ij,k->ikj', j_diag, s_minor)
        temp4 = sigma_sq[:, None, :]
        lik = (temp1 - temp2) * temp3 / 2.0 / temp4
        lt = lik * wl + bl
        log_max = jnp.max(lt, axis=1, keepdims=True)
        p_tilde = jax.nn.softmax(lt - log_max, axis=1)
        p = p_tilde * (1.0 - dl) + p * dl
    return p


if __name__ == "__main__":
    # small shapes consistent with the module's forward
    batch, length, input_size, n_layers = 2, 4, 8, 3
    sigma_square_v = 0.5

    key = jax.random.PRNGKey(0)
    kz, kj = jax.random.split(key)
    z = jax.random.normal(kz, (batch, input_size), jnp.float32)
    j_matrix = jax.random.normal(kj, (batch, input_size, input_size), jnp.float32)

    # parameters exactly as in CHEMPLayer.__init__ (one set per layer, stacked)
    delta = jnp.full((n_layers, input_size), 0.28, jnp.float32)
    w = jnp.ones((n_layers, length, input_size), jnp.float32)
    b = jnp.zeros((n_layers, length, input_size), jnp.float32)

    p_out = chemp_forward(z, j_matrix, sigma_square_v, delta, w, b,
                          length=length, n_layers=n_layers)
    p_out = jax.block_until_ready(p_out)

    p_ref = chemp_reference(z, j_matrix, sigma_square_v, delta, w, b,
                            length=length, n_layers=n_layers)
    np.testing.assert_allclose(np.asarray(p_out), np.asarray(p_ref),
                               rtol=1e-3, atol=1e-3)

    print("KERNEL_OK")
</pallas_src>

<mosaic_0001>
module attributes {stable_mosaic.version = 11 : i64} {
  func.func @_chemp_kernel(%arg0: i32, %arg1: i32, %arg2: memref<1x1x8xf32, #tpu.memory_space<vmem>>, %arg3: memref<1x8x8xf32, #tpu.memory_space<vmem>>, %arg4: memref<1x1x8xf32, #tpu.memory_space<vmem>>, %arg5: memref<1xf32, #tpu.memory_space<smem>>, %arg6: memref<1x1x8xf32, #tpu.memory_space<vmem>>, %arg7: memref<1x4x8xf32, #tpu.memory_space<vmem>>, %arg8: memref<1x4x8xf32, #tpu.memory_space<vmem>>, %arg9: memref<1x4x8xf32, #tpu.memory_space<vmem>>, %arg10: memref<8x8xf32, #tpu.memory_space<vmem>>, %arg11: memref<4x8xf32, #tpu.memory_space<vmem>>, %arg12: memref<4x8xf32, #tpu.memory_space<vmem>>) attributes {dimension_semantics = [#tpu.dimension_semantics<parallel>, #tpu.dimension_semantics<arbitrary>], iteration_bounds = array<i64: 2, 3>, scalar_prefetch = 0 : i64, scratch_operands = 3 : i64, tpu.core_type = #tpu.core_type<tc>, window_params = [{transform_indices = @transform_0, window_bounds = array<i64: 1, 1, 8>}, {transform_indices = @transform_1, window_bounds = array<i64: 1, 8, 8>}, {transform_indices = @transform_2, window_bounds = array<i64: 1, 1, 8>}, {transform_indices = @transform_3, window_bounds = array<i64: 1>}, {transform_indices = @transform_4, window_bounds = array<i64: 1, 1, 8>}, {transform_indices = @transform_5, window_bounds = array<i64: 1, 4, 8>}, {transform_indices = @transform_6, window_bounds = array<i64: 1, 4, 8>}, {transform_indices = @transform_7, window_bounds = array<i64: 1, 4, 8>}]} {
    %c0 = arith.constant 0 : index
    %c0_0 = arith.constant 0 : index
    %c0_1 = arith.constant 0 : index
    %0 = vector.load %arg2[%c0, %c0_0, %c0_1] : memref<1x1x8xf32, #tpu.memory_space<vmem>>, vector<1x1x8xf32>
    %1 = vector.shape_cast %0 : vector<1x1x8xf32> to vector<1x8xf32>
    %c0_2 = arith.constant 0 : index
    %c0_3 = arith.constant 0 : index
    %c0_4 = arith.constant 0 : index
    %2 = vector.load %arg4[%c0_2, %c0_3, %c0_4] : memref<1x1x8xf32, #tpu.memory_space<vmem>>, vector<1x1x8xf32>
    %3 = vector.shape_cast %2 : vector<1x1x8xf32> to vector<1x8xf32>
    %c0_5 = arith.constant 0 : index
    %4 = memref.load %arg5[%c0_5] : memref<1xf32, #tpu.memory_space<smem>>
    %5 = tpu.iota {dimensions = array<i32: 0>} : vector<4x1xi32>
    %6 = arith.sitofp %5 : vector<4x1xi32> to vector<4x1xf32>
    %cst = arith.constant 2.000000e+00 : f32
    %7 = vector.broadcast %cst : f32 to vector<4x1xf32>
    %8 = arith.mulf %6, %7 : vector<4x1xf32>
    %cst_6 = arith.constant -3.000000e+00 : f32
    %9 = vector.broadcast %cst_6 : f32 to vector<4x1xf32>
    %10 = arith.addf %8, %9 : vector<4x1xf32>
    %11 = arith.mulf %10, %10 : vector<4x1xf32>
    %c0_i32 = arith.constant 0 : i32
    %12 = arith.cmpi eq, %arg1, %c0_i32 : i32
    %13 = arith.extui %12 : i1 to i32
    %c0_i32_7 = arith.constant 0 : i32
    %14 = arith.cmpi ne, %13, %c0_i32_7 : i32
    scf.if %14 {
      %cst_42 = arith.constant 2.500000e-01 : f32
      %80 = vector.broadcast %cst_42 : f32 to vector<4x8xf32>
      %c0_43 = arith.constant 0 : index
      %c0_44 = arith.constant 0 : index
      %c0_45 = arith.constant 0 : index
      %81 = vector.load %arg9[%c0_43, %c0_44, %c0_45] : memref<1x4x8xf32, #tpu.memory_space<vmem>>, vector<1x4x8xf32>
      %82 = vector.shape_cast %81 : vector<1x4x8xf32> to vector<4x8xf32>
      %83 = vector.shape_cast %80 : vector<4x8xf32> to vector<1x4x8xf32>
      tpu.vector_store %arg9[%c0_43, %c0_44, %c0_45], %83 {strides = array<i32>} : memref<1x4x8xf32, #tpu.memory_space<vmem>>, vector<1x4x8xf32>,
      %c0_46 = arith.constant 0 : index
      %c0_47 = arith.constant 0 : index
      %c0_48 = arith.constant 0 : index
      %84 = vector.load %arg3[%c0_46, %c0_47, %c0_48] : memref<1x8x8xf32, #tpu.memory_space<vmem>>, vector<1x8x8xf32>
      %85 = vector.shape_cast %84 : vector<1x8x8xf32> to vector<8x8xf32>
      %86 = arith.mulf %85, %85 : vector<8x8xf32>
      %c0_49 = arith.constant 0 : index
      %c0_50 = arith.constant 0 : index
      %87 = vector.load %arg10[%c0_49, %c0_50] : memref<8x8xf32, #tpu.memory_space<vmem>>, vector<8x8xf32>
      tpu.vector_store %arg10[%c0_49, %c0_50], %86 {strides = array<i32>} : memref<8x8xf32, #tpu.memory_space<vmem>>, vector<8x8xf32>,
      %cst_51 = arith.constant -3.000000e+00 : f32
      %88 = vector.broadcast %cst_51 : f32 to vector<4x1xf32>
      %89 = arith.addf %10, %88 : vector<4x1xf32>
      %90 = vector.broadcast %3 : vector<1x8xf32> to vector<4x8xf32>
      %91 = vector.broadcast %89 : vector<4x1xf32> to vector<4x8xf32>
      %92 = arith.mulf %90, %91 : vector<4x8xf32>
      %c0_52 = arith.constant 0 : index
      %c0_53 = arith.constant 0 : index
      %93 = vector.load %arg11[%c0_52, %c0_53] : memref<4x8xf32, #tpu.memory_space<vmem>>, vector<4x8xf32>
      tpu.vector_store %arg11[%c0_52, %c0_53], %92 {strides = array<i32>} : memref<4x8xf32, #tpu.memory_space<vmem>>, vector<4x8xf32>,
      %cst_54 = arith.constant 5.000000e-01 : f32
      %94 = vector.broadcast %cst_54 : f32 to vector<1x8xf32>
      %95 = arith.mulf %94, %3 : vector<1x8xf32>
      %cst_55 = arith.constant -3.000000e+00 : f32
      %96 = vector.broadcast %cst_55 : f32 to vector<4x1xf32>
      %97 = arith.subf %10, %96 : vector<4x1xf32>
      %98 = vector.broadcast %95 : vector<1x8xf32> to vector<4x8xf32>
      %99 = vector.broadcast %97 : vector<4x1xf32> to vector<4x8xf32>
      %100 = arith.mulf %98, %99 : vector<4x8xf32>
      %c0_56 = arith.constant 0 : index
      %c0_57 = arith.constant 0 : index
      %101 = vector.load %arg12[%c0_56, %c0_57] : memref<4x8xf32, #tpu.memory_space<vmem>>, vector<4x8xf32>
      tpu.vector_store %arg12[%c0_56, %c0_57], %100 {strides = array<i32>} : memref<4x8xf32, #tpu.memory_space<vmem>>, vector<4x8xf32>,
    } else {
    }
    %c0_8 = arith.constant 0 : index
    %c0_9 = arith.constant 0 : index
    %c0_10 = arith.constant 0 : index
    %15 = vector.load %arg9[%c0_8, %c0_9, %c0_10] : memref<1x4x8xf32, #tpu.memory_space<vmem>>, vector<1x4x8xf32>
    %16 = vector.shape_cast %15 : vector<1x4x8xf32> to vector<4x8xf32>
    %c0_11 = arith.constant 0 : index
    %c0_12 = arith.constant 0 : index
    %c0_13 = arith.constant 0 : index
    %17 = vector.load %arg7[%c0_11, %c0_12, %c0_13] : memref<1x4x8xf32, #tpu.memory_space<vmem>>, vector<1x4x8xf32>
    %18 = vector.shape_cast %17 : vector<1x4x8xf32> to vector<4x8xf32>
    %c0_14 = arith.constant 0 : index
    %c0_15 = arith.constant 0 : index
    %c0_16 = arith.constant 0 : index
    %19 = vector.load %arg8[%c0_14, %c0_15, %c0_16] : memref<1x4x8xf32, #tpu.memory_space<vmem>>, vector<1x4x8xf32>
    %20 = vector.shape_cast %19 : vector<1x4x8xf32> to vector<4x8xf32>
    %c0_17 = arith.constant 0 : index
    %c0_18 = arith.constant 0 : index
    %c0_19 = arith.constant 0 : index
    %21 = vector.load %arg6[%c0_17, %c0_18, %c0_19] : memref<1x1x8xf32, #tpu.memory_space<vmem>>, vector<1x1x8xf32>
    %22 = vector.shape_cast %21 : vector<1x1x8xf32> to vector<1x8xf32>
    %23 = vector.broadcast %10 : vector<4x1xf32> to vector<4x8xf32>
    %24 = arith.mulf %16, %23 : vector<4x8xf32>
    %cst_20 = arith.constant dense<0.000000e+00> : vector<8xf32>
    %25 = vector.multi_reduction <add>, %24, %cst_20 [0] : vector<4x8xf32> to vector<8xf32>
    %26 = vector.shape_cast %25 : vector<8xf32> to vector<1x8xf32>
    %27 = vector.broadcast %11 : vector<4x1xf32> to vector<4x8xf32>
    %28 = arith.mulf %16, %27 : vector<4x8xf32>
    %cst_21 = arith.constant dense<0.000000e+00> : vector<8xf32>
    %29 = vector.multi_reduction <add>, %28, %cst_21 [0] : vector<4x8xf32> to vector<8xf32>
    %30 = vector.shape_cast %29 : vector<8xf32> to vector<1x8xf32>
    %31 = arith.mulf %26, %26 : vector<1x8xf32>
    %32 = arith.subf %30, %31 : vector<1x8xf32>
    %c0_22 = arith.constant 0 : index
    %c0_23 = arith.constant 0 : index
    %c0_24 = arith.constant 0 : index
    %33 = vector.load %arg3[%c0_22, %c0_23, %c0_24] : memref<1x8x8xf32, #tpu.memory_space<vmem>>, vector<1x8x8xf32>
    %34 = vector.shape_cast %33 : vector<1x8x8xf32> to vector<8x8xf32>
    %cst_25 = arith.constant dense<0.000000e+00> : vector<1x8xf32>
    %35 = tpu.matmul %26, %34, %cst_25 {dimension_numbers = #tpu.dot_dimension_numbers<[1], [0], [0], [1], [0, 0, 1, 1], [], []>} : vector<1x8xf32>, vector<8x8xf32>, vector<1x8xf32> -> vector<1x8xf32>
    %36 = arith.mulf %26, %3 : vector<1x8xf32>
    %37 = arith.subf %35, %36 : vector<1x8xf32>
    %c0_26 = arith.constant 0 : index
    %c0_27 = arith.constant 0 : index
    %38 = vector.load %arg10[%c0_26, %c0_27] : memref<8x8xf32, #tpu.memory_space<vmem>>, vector<8x8xf32>
    %cst_28 = arith.constant dense<0.000000e+00> : vector<1x8xf32>
    %39 = tpu.matmul %32, %38, %cst_28 {dimension_numbers = #tpu.dot_dimension_numbers<[1], [0], [0], [1], [0, 0, 1, 1], [], []>} : vector<1x8xf32>, vector<8x8xf32>, vector<1x8xf32> -> vector<1x8xf32>
    %40 = vector.broadcast %4 : f32 to vector<1x8xf32>
    %41 = arith.addf %39, %40 : vector<1x8xf32>
    %42 = arith.mulf %3, %3 : vector<1x8xf32>
    %43 = arith.mulf %32, %42 : vector<1x8xf32>
    %44 = arith.subf %41, %43 : vector<1x8xf32>
    %cst_29 = arith.constant 1.000000e+00 : f32
    %45 = vector.broadcast %cst_29 : f32 to vector<1x8xf32>
    %46 = arith.divf %45, %44 : vector<1x8xf32>
    %47 = arith.subf %1, %37 : vector<1x8xf32>
    %cst_30 = arith.constant 2.000000e+00 : f32
    %48 = vector.broadcast %cst_30 : f32 to vector<1x8xf32>
    %49 = arith.mulf %48, %47 : vector<1x8xf32>
    %c0_31 = arith.constant 0 : index
    %c0_32 = arith.constant 0 : index
    %50 = vector.load %arg11[%c0_31, %c0_32] : memref<4x8xf32, #tpu.memory_space<vmem>>, vector<4x8xf32>
    %51 = vector.broadcast %49 : vector<1x8xf32> to vector<4x8xf32>
    %52 = arith.subf %51, %50 : vector<4x8xf32>
    %c0_33 = arith.constant 0 : index
    %c0_34 = arith.constant 0 : index
    %53 = vector.load %arg12[%c0_33, %c0_34] : memref<4x8xf32, #tpu.memory_space<vmem>>, vector<4x8xf32>
    %54 = arith.mulf %52, %53 : vector<4x8xf32>
    %55 = vector.broadcast %46 : vector<1x8xf32> to vector<4x8xf32>
    %56 = arith.mulf %54, %55 : vector<4x8xf32>
    %57 = arith.mulf %56, %18 : vector<4x8xf32>
    %58 = arith.addf %57, %20 : vector<4x8xf32>
    %cst_35 = arith.constant dense<0xFF800000> : vector<8xf32>
    %59 = vector.multi_reduction <maximumf>, %58, %cst_35 [0] : vector<4x8xf32> to vector<8xf32>
    %60 = vector.shape_cast %59 : vector<8xf32> to vector<1x8xf32>
    %61 = vector.broadcast %60 : vector<1x8xf32> to vector<4x8xf32>
    %62 = arith.subf %58, %61 : vector<4x8xf32>
    %63 = math.exp %62 : vector<4x8xf32>
    %cst_36 = arith.constant dense<0.000000e+00> : vector<8xf32>
    %64 = vector.multi_reduction <add>, %63, %cst_36 [0] : vector<4x8xf32> to vector<8xf32>
    %65 = vector.shape_cast %64 : vector<8xf32> to vector<1x8xf32>
    %cst_37 = arith.constant 1.000000e+00 : f32
    %66 = vector.broadcast %cst_37 : f32 to vector<1x8xf32>
    %67 = arith.divf %66, %65 : vector<1x8xf32>
    %68 = vector.broadcast %67 : vector<1x8xf32> to vector<4x8xf32>
    %69 = arith.mulf %63, %68 : vector<4x8xf32>
    %cst_38 = arith.constant 1.000000e+00 : f32
    %70 = vector.broadcast %cst_38 : f32 to vector<1x8xf32>
    %71 = arith.subf %70, %22 : vector<1x8xf32>
    %72 = vector.broadcast %71 : vector<1x8xf32> to vector<4x8xf32>
    %73 = arith.mulf %69, %72 : vector<4x8xf32>
    %74 = vector.broadcast %22 : vector<1x8xf32> to vector<4x8xf32>
    %75 = arith.mulf %16, %74 : vector<4x8xf32>
    %76 = arith.addf %73, %75 : vector<4x8xf32>
    %c0_39 = arith.constant 0 : index
    %c0_40 = arith.constant 0 : index
    %c0_41 = arith.constant 0 : index
    %77 = vector.load %arg9[%c0_39, %c0_40, %c0_41] : memref<1x4x8xf32, #tpu.memory_space<vmem>>, vector<1x4x8xf32>
    %78 = vector.shape_cast %77 : vector<1x4x8xf32> to vector<4x8xf32>
    %79 = vector.shape_cast %76 : vector<4x8xf32> to vector<1x4x8xf32>
    tpu.vector_store %arg9[%c0_39, %c0_40, %c0_41], %79 {strides = array<i32>} : memref<1x4x8xf32, #tpu.memory_space<vmem>>, vector<1x4x8xf32>,
    return
  }
  func.func @transform_0(%arg0: i32, %arg1: i32) -> (i32, i32, i32) {
    %c0_i32 = arith.constant 0 : i32
    %c0_i32_0 = arith.constant 0 : i32
    %c0_i32_1 = arith.constant 0 : i32
    return %arg0, %c0_i32, %c0_i32_0 : i32, i32, i32
  }
  func.func @transform_1(%arg0: i32, %arg1: i32) -> (i32, i32, i32) {
    %c0_i32 = arith.constant 0 : i32
    %c0_i32_0 = arith.constant 0 : i32
    %c0_i32_1 = arith.constant 0 : i32
    return %arg0, %c0_i32, %c0_i32_0 : i32, i32, i32
  }
  func.func @transform_2(%arg0: i32, %arg1: i32) -> (i32, i32, i32) {
    %c0_i32 = arith.constant 0 : i32
    %c0_i32_0 = arith.constant 0 : i32
    %c0_i32_1 = arith.constant 0 : i32
    return %arg0, %c0_i32, %c0_i32_0 : i32, i32, i32
  }
  func.func @transform_3(%arg0: i32, %arg1: i32) -> i32 {
    %c0_i32 = arith.constant 0 : i32
    %c0_i32_0 = arith.constant 0 : i32
    return %c0_i32 : i32
  }
  func.func @transform_4(%arg0: i32, %arg1: i32) -> (i32, i32, i32) {
    %c0_i32 = arith.constant 0 : i32
    %c0_i32_0 = arith.constant 0 : i32
    %c0_i32_1 = arith.constant 0 : i32
    return %arg1, %c0_i32, %c0_i32_0 : i32, i32, i32
  }
  func.func @transform_5(%arg0: i32, %arg1: i32) -> (i32, i32, i32) {
    %c0_i32 = arith.constant 0 : i32
    %c0_i32_0 = arith.constant 0 : i32
    %c0_i32_1 = arith.constant 0 : i32
    return %arg1, %c0_i32, %c0_i32_0 : i32, i32, i32
  }
  func.func @transform_6(%arg0: i32, %arg1: i32) -> (i32, i32, i32) {
    %c0_i32 = arith.constant 0 : i32
    %c0_i32_0 = arith.constant 0 : i32
    %c0_i32_1 = arith.constant 0 : i32
    return %arg1, %c0_i32, %c0_i32_0 : i32, i32, i32
  }
  func.func @transform_7(%arg0: i32, %arg1: i32) -> (i32, i32, i32) {
    %c0_i32 = arith.constant 0 : i32
    %c0_i32_0 = arith.constant 0 : i32
    %c0_i32_1 = arith.constant 0 : i32
    return %arg0, %c0_i32, %c0_i32_0 : i32, i32, i32
  }
}

</mosaic_0001>

<llo_original>
// kernel: tpu_custom_call.1
$region0: #{tpu_custom_call.1}
  #allocation0 [shape = 'u32[]', space=smem, size = 0x4, offset = 0x4, fixed_abs, tag = 'smem constant byte address 0x4 - core index']
  #allocation1 [shape = 'u32[144,128]{1,0:T(1,128)}', space=vmem, size = 0x12000, scoped, tag = 'internal scratch']
  #allocation2 [shape = 'f32[8,8]{1,0:T(8,128)}', space=vmem, size = 0x1000, scoped, tag = 'scratch operand']
  #allocation3 [shape = 'f32[4,8]{1,0:T(4,128)}', space=vmem, size = 0x800, scoped, tag = 'scratch operand']
  #allocation4 [shape = 'f32[4,8]{1,0:T(4,128)}', space=vmem, size = 0x800, scoped, tag = 'scratch operand']
  #allocation5 [shape = 'f32[1]{0:T(128)S(6)}', space=smem, size = 0x200, scoped, tag = 'scoped memory for tpu_custom_call.1']
  %s0 = inlined_call_operand.vmem [shape: f32[2,1,8], index: 0, kind: input, shape index: {}]
  %s1 = inlined_call_operand.hbm [shape: f32[2,8,8], index: 1, kind: input, shape index: {}]
  %s2 = inlined_call_operand.hbm [shape: f32[2,1,8], index: 2, kind: input, shape index: {}]
  %s3 = inlined_call_operand.<no memory space> [shape: f32[1], index: 3, kind: input, shape index: {}]
  %s4 = inlined_call_operand.vmem [shape: f32[3,1,8], index: 4, kind: input, shape index: {}]
  %s5 = inlined_call_operand.hbm [shape: f32[3,4,8], index: 5, kind: input, shape index: {}]
  %s6 = inlined_call_operand.hbm [shape: f32[3,4,8], index: 6, kind: input, shape index: {}]
  %s7 = inlined_call_operand.hbm [shape: f32[2,4,8], index: 7, kind: output, shape index: {}]
  %s8 = sld [smem:[#allocation0]]
  $region81: #{tpu_custom_call.1} parent=0
    _
  %s10 = ssub.s32 1, %s8
  %s11 = scalar_select 0, %s10, %s8
  %12 = sst [smem:[#allocation5]] %s3
  $region1: #{tpu_custom_call.1} parent=0
    #allocation6 [shape = 'u8[8192]{0}', space=vmem, size = 0x2000, scoped, tag = 'input window, operand 1']
    #allocation7 [shape = 's32[2]{0}', space=sflag, size = 0x8, scoped, tag = 'scoped memory for tpu_custom_call.1']
    #allocation8 [shape = 's32[2]{0}', space=sflag, size = 0x8, scoped, tag = 'scoped memory for tpu_custom_call.1']
    #allocation9 [shape = 'u8[1024]{0}', space=vmem, size = 0x400, scoped, tag = 'input window, operand 2']
    #allocation10 [shape = 's32[2]{0}', space=sflag, size = 0x8, scoped, tag = 'scoped memory for tpu_custom_call.1']
    #allocation11 [shape = 'u8[4096]{0}', space=vmem, size = 0x1000, scoped, tag = 'input window, operand 5']
    #allocation12 [shape = 'u8[4096]{0}', space=vmem, size = 0x1000, scoped, tag = 'input window, operand 6']
    #allocation13 [shape = 's32[2]{0}', space=sflag, size = 0x8, scoped, tag = 'scoped memory for tpu_custom_call.1']
    #allocation14 [shape = 'u8[4096]{0}', space=vmem, size = 0x1000, scoped, tag = 'output window, operand 0']
    %13 = vsyncpa [#allocation7], 0
    %s14 = scalar_lea.sflag [#allocation7], 1
    %15 = vsyncpa %s14, 0
    %16 = vsyncpa [#allocation10], 0
    %s17 = scalar_lea.sflag [#allocation10], 1
    %18 = vsyncpa %s17, 0
    %19 = vsyncpa [#allocation13], 0
    %s20 = scalar_lea.sflag [#allocation13], 1
    %21 = vsyncpa %s20, 0
    %22 = vsyncpa [#allocation8], 0
    %s23 = scalar_lea.sflag [#allocation8], 1
    %24 = vsyncpa %s23, 0
    loop: start=0, step=1, limit=8
    $region2: #{tpu_custom_call.1} parent=1 // loop_pre_header
      _
    $region3: #{tpu_custom_call.1} parent=1 // loop_header
      %s26 = sphi 0, %s30
      %p27 = scmp.ge.s32.totalorder %s26, 8
      %s33 = sphi 0, %s45
      %s34 = sphi 0, %s41
      %s35 = sphi 0, %s33
      %s36 = sphi 0, %s34
      %s37 = sphi 0, %s35
      %s38 = sphi 0, %s36
      %s48 = sphi 0, %s50
      %s51 = sphi 0, %s48
      %s52 = sphi 0, %s51
      %s68 = sphi 0, %s52
      %s74 = sphi 0, %s76
      %s77 = sphi 0, %s74
      %s78 = sphi 0, %s77
      %s94 = sphi 0, %s78
      %s100 = sphi 0, %s102
      %s103 = sphi 0, %s100
      %s104 = sphi 0, %s103
      %s120 = sphi 0, %s104
      %s124 = sphi 0, %s124
      %s126 = sphi 0, %s124
      %s127 = sphi 0, %s126
      %s141 = sphi 0, %s127
      %s147 = sphi 0, %s149
      %s150 = sphi 0, %s147
      %s151 = sphi 0, %s150
      %s167 = sphi 0, %s151
      %s173 = sphi 0, %s175
      %s176 = sphi 0, %s173
      %s177 = sphi 0, %s176
      %s193 = sphi 0, %s177
      %s199 = sphi 0, %s201
      %s202 = sphi 0, %s199
      %s203 = sphi 0, %s202
      %s219 = sphi 0, %s203
      %s225 = sphi 0, %s227
      %s228 = sphi 0, %s225
      %s229 = sphi 0, %s228
      %s245 = sphi 0, %s229
    $region4: #{tpu_custom_call.1} parent=1 // loop_header_branch
      %29 = sbr.rel (%p27) target = $region8
    $region5: #{tpu_custom_call.1} parent=1 // loop_body
      %s31 = ssub.s32 %s26, 1
      %s32 = ssub.s32 %s26, 2
      %s39 = sadd.s32 1, %s34
      %p40 = scmp.ge.s32.totalorder %s39, 3
      %s41 = scalar_select %p40, 0, %s39
      %s42 = sadd.s32 1, %s33
      %s43 = scalar_select %p40, %s42, %s33
      %p44 = scmp.ge.s32.totalorder %s43, 2
      %s45 = scalar_select %p44, 0, %s43
      %s46 = ssub.s32 %s33, %s45
      %p47 = scmp.eq.s32.totalorder %s46, 0
      %s49 = sadd.s32 %s48, 1
      %s50 = scalar_select %p47, %s48, %s49
      %p53 = pneg %p47
      %p54 = scmp.eq.s32.totalorder %s26, 5
      %p55 = por %p53, %p54
      %p56 = scmp.ne.s32.totalorder %s48, %s51
      %p57 = scmp.eq.s32.totalorder %s26, 0
      %p58 = por %p56, %p57
      %p59 = scmp.ne.s32.totalorder %s48, %s51
      %p60 = scmp.eq.s32.totalorder %s31, 5
      %p61 = por %p59, %p60
      %p62 = scmp.ne.s32.totalorder %s51, %s52
      %p63 = scmp.eq.s32.totalorder %s31, 0
      %p64 = por %p62, %p63
      %p65 = scmp.ne.s32.totalorder %s51, %s52
      %p66 = scmp.eq.s32.totalorder %s32, 5
      %p67 = por %p65, %p66
      %p69 = scmp.ne.s32.totalorder %s52, %s68
      %p70 = scmp.eq.s32.totalorder %s32, 0
      %p71 = por %p69, %p70
      %s72 = ssub.s32 %s33, %s45
      %p73 = scmp.eq.s32.totalorder %s72, 0
      %s75 = sadd.s32 %s74, 1
      %s76 = scalar_select %p73, %s74, %s75
      %p79 = pneg %p73
      %p80 = scmp.eq.s32.totalorder %s26, 5
      %p81 = por %p79, %p80
      %p82 = scmp.ne.s32.totalorder %s74, %s77
      %p83 = scmp.eq.s32.totalorder %s26, 0
      %p84 = por %p82, %p83
      %p85 = scmp.ne.s32.totalorder %s74, %s77
      %p86 = scmp.eq.s32.totalorder %s31, 5
      %p87 = por %p85, %p86
      %p88 = scmp.ne.s32.totalorder %s77, %s78
      %p89 = scmp.eq.s32.totalorder %s31, 0
      %p90 = por %p88, %p89
      %p91 = scmp.ne.s32.totalorder %s77, %s78
      %p92 = scmp.eq.s32.totalorder %s32, 5
      %p93 = por %p91, %p92
      %p95 = scmp.ne.s32.totalorder %s78, %s94
      %p96 = scmp.eq.s32.totalorder %s32, 0
      %p97 = por %p95, %p96
      %s98 = ssub.s32 %s33, %s45
      %p99 = scmp.eq.s32.totalorder %s98, 0
      %s101 = sadd.s32 %s100, 1
      %s102 = scalar_select %p99, %s100, %s101
      %p105 = pneg %p99
      %p106 = scmp.eq.s32.totalorder %s26, 5
      %p107 = por %p105, %p106
      %p108 = scmp.ne.s32.totalorder %s100, %s103
      %p109 = scmp.eq.s32.totalorder %s26, 0
      %p110 = por %p108, %p109
      %p111 = scmp.ne.s32.totalorder %s100, %s103
      %p112 = scmp.eq.s32.totalorder %s31, 5
      %p113 = por %p111, %p112
      %p114 = scmp.ne.s32.totalorder %s103, %s104
      %p115 = scmp.eq.s32.totalorder %s31, 0
      %p116 = por %p114, %p115
      %p117 = scmp.ne.s32.totalorder %s103, %s104
      %p118 = scmp.eq.s32.totalorder %s32, 5
      %p119 = por %p117, %p118
      %p121 = scmp.ne.s32.totalorder %s104, %s120
      %p122 = scmp.eq.s32.totalorder %s32, 0
      %p123 = por %p121, %p122
      %s125 = sadd.s32 %s124, 1
      %p128 = scmp.eq.s32.totalorder %s26, 5
      %p129 = scmp.ne.s32.totalorder %s124, %s126
      %p130 = scmp.eq.s32.totalorder %s26, 0
      %p131 = por %p129, %p130
      %p132 = scmp.ne.s32.totalorder %s124, %s126
      %p133 = scmp.eq.s32.totalorder %s31, 5
      %p134 = por %p132, %p133
      %p135 = scmp.ne.s32.totalorder %s126, %s127
      %p136 = scmp.eq.s32.totalorder %s31, 0
      %p137 = por %p135, %p136
      %p138 = scmp.ne.s32.totalorder %s126, %s127
      %p139 = scmp.eq.s32.totalorder %s32, 5
      %p140 = por %p138, %p139
      %p142 = scmp.ne.s32.totalorder %s127, %s141
      %p143 = scmp.eq.s32.totalorder %s32, 0
      %p144 = por %p142, %p143
      %s145 = ssub.s32 %s34, %s41
      %p146 = scmp.eq.s32.totalorder %s145, 0
      %s148 = sadd.s32 %s147, 1
      %s149 = scalar_select %p146, %s147, %s148
      %p152 = pneg %p146
      %p153 = scmp.eq.s32.totalorder %s26, 5
      %p154 = por %p152, %p153
      %p155 = scmp.ne.s32.totalorder %s147, %s150
      %p156 = scmp.eq.s32.totalorder %s26, 0
      %p157 = por %p155, %p156
      %p158 = scmp.ne.s32.totalorder %s147, %s150
      %p159 = scmp.eq.s32.totalorder %s31, 5
      %p160 = por %p158, %p159
      %p161 = scmp.ne.s32.totalorder %s150, %s151
      %p162 = scmp.eq.s32.totalorder %s31, 0
      %p163 = por %p161, %p162
      %p164 = scmp.ne.s32.totalorder %s150, %s151
      %p165 = scmp.eq.s32.totalorder %s32, 5
      %p166 = por %p164, %p165
      %p168 = scmp.ne.s32.totalorder %s151, %s167
      %p169 = scmp.eq.s32.totalorder %s32, 0
      %p170 = por %p168, %p169
      %s171 = ssub.s32 %s34, %s41
      %p172 = scmp.eq.s32.totalorder %s171, 0
      %s174 = sadd.s32 %s173, 1
      %s175 = scalar_select %p172, %s173, %s174
      %p178 = pneg %p172
      %p179 = scmp.eq.s32.totalorder %s26, 5
      %p180 = por %p178, %p179
      %p181 = scmp.ne.s32.totalorder %s173, %s176
      %p182 = scmp.eq.s32.totalorder %s26, 0
      %p183 = por %p181, %p182
      %p184 = scmp.ne.s32.totalorder %s173, %s176
      %p185 = scmp.eq.s32.totalorder %s31, 5
      %p186 = por %p184, %p185
      %p187 = scmp.ne.s32.totalorder %s176, %s177
      %p188 = scmp.eq.s32.totalorder %s31, 0
      %p189 = por %p187, %p188
      %p190 = scmp.ne.s32.totalorder %s176, %s177
      %p191 = scmp.eq.s32.totalorder %s32, 5
      %p192 = por %p190, %p191
      %p194 = scmp.ne.s32.totalorder %s177, %s193
      %p195 = scmp.eq.s32.totalorder %s32, 0
      %p196 = por %p194, %p195
      %s197 = ssub.s32 %s34, %s41
      %p198 = scmp.eq.s32.totalorder %s197, 0
      %s200 = sadd.s32 %s199, 1
      %s201 = scalar_select %p198, %s199, %s200
      %p204 = pneg %p198
      %p205 = scmp.eq.s32.totalorder %s26, 5
      %p206 = por %p204, %p205
      %p207 = scmp.ne.s32.totalorder %s199, %s202
      %p208 = scmp.eq.s32.totalorder %s26, 0
      %p209 = por %p207, %p208
      %p210 = scmp.ne.s32.totalorder %s199, %s202
      %p211 = scmp.eq.s32.totalorder %s31, 5
      %p212 = por %p210, %p211
      %p213 = scmp.ne.s32.totalorder %s202, %s203
      %p214 = scmp.eq.s32.totalorder %s31, 0
      %p215 = por %p213, %p214
      %p216 = scmp.ne.s32.totalorder %s202, %s203
      %p217 = scmp.eq.s32.totalorder %s32, 5
      %p218 = por %p216, %p217
      %p220 = scmp.ne.s32.totalorder %s203, %s219
      %p221 = scmp.eq.s32.totalorder %s32, 0
      %p222 = por %p220, %p221
      %s223 = ssub.s32 %s33, %s45
      %p224 = scmp.eq.s32.totalorder %s223, 0
      %s226 = sadd.s32 %s225, 1
      %s227 = scalar_select %p224, %s225, %s226
      %p230 = pneg %p224
      %p231 = scmp.eq.s32.totalorder %s26, 5
      %p232 = por %p230, %p231
      %p233 = scmp.ne.s32.totalorder %s225, %s228
      %p234 = scmp.eq.s32.totalorder %s26, 0
      %p235 = por %p233, %p234
      %p236 = scmp.ne.s32.totalorder %s225, %s228
      %p237 = scmp.eq.s32.totalorder %s31, 5
      %p238 = por %p236, %p237
      %p239 = scmp.ne.s32.totalorder %s228, %s229
      %p240 = scmp.eq.s32.totalorder %s31, 0
      %p241 = por %p239, %p240
      %p242 = scmp.ne.s32.totalorder %s228, %s229
      %p243 = scmp.eq.s32.totalorder %s32, 5
      %p244 = por %p242, %p243
      %p246 = scmp.ne.s32.totalorder %s229, %s245
      %p247 = scmp.eq.s32.totalorder %s32, 0
      %p248 = por %p246, %p247
      %p249 = scmp.le.s32.totalorder 1, %s26
      %p250 = scmp.lt.s32.totalorder %s26, 7
      %p251 = pnand %p249, %p250
      %p252 = pneg %p251
      // Predicated region
      $region9: #{tpu_custom_call.1} parent=5 // pred_check
        _
      $region10: #{tpu_custom_call.1} parent=5 // pred_check_branch
        %254 = sbr.rel (%p251) target = $region12
      $region11: #{tpu_custom_call.1} parent=5 // pred_region
        %s255 = ssub.s32 %s26, 1
        // Predicated region
        $region13: #{tpu_custom_call.1} parent=11 // pred_check
          %p256 = pneg %p137
        $region14: #{tpu_custom_call.1} parent=11 // pred_check_branch
          %258 = sbr.rel (%p256) target = $region16
        $region15: #{tpu_custom_call.1} parent=11 // pred_region
          _
        $region16: #{tpu_custom_call.1} parent=11 // pred_fallthru
          _
      $region12: #{tpu_custom_call.1} parent=5 // pred_fallthru
        _
      %p259 = scmp.lt.s32.totalorder %s26, 6
      // Predicated region
      $region17: #{tpu_custom_call.1} parent=5 // pred_check
        %p260 = pneg %p259
      $region18: #{tpu_custom_call.1} parent=5 // pred_check_branch
        %262 = sbr.rel (%p260) target = $region20
      $region19: #{tpu_custom_call.1} parent=5 // pred_region
        // Predicated region
        $region21: #{tpu_custom_call.1} parent=19 // pred_check
          %p263 = pneg %p58
        $region22: #{tpu_custom_call.1} parent=19 // pred_check_branch
          %265 = sbr.rel (%p263) target = $region24
        $region23: #{tpu_custom_call.1} parent=19 // pred_region
          %p266 = scmp.lt.s32.totalorder %s33, 1
          %s267 = scalar_select %p266, %s33, 1
          %s268 = scalar_lea.vmem %s0, %s267
        $region24: #{tpu_custom_call.1} parent=19 // pred_fallthru
          _
        // Predicated region
        $region25: #{tpu_custom_call.1} parent=19 // pred_check
          %p269 = pneg %p84
        $region26: #{tpu_custom_call.1} parent=19 // pred_check_branch
          %271 = sbr.rel (%p269) target = $region28
        $region27: #{tpu_custom_call.1} parent=19 // pred_region
          %s272 = sand.u32 %s74, 1
          %s273 = scalar_lea.sflag [#allocation7], %s272
          %s274 = sand.u32 %s74, 1
          %s275 = smul.addr %s274, 8
          %s276 = scalar_lea.vmem [#allocation6], %s275
          %s278 = ssub.s32 128, 128
          %279 = vsyncadd %s273, %s278
          %s280 = smul.addr %s33, 128
          %s281 = scalar_lea.hbm %s1, %s280
          %s283 = sshll.u32 %s276, 4
          %s284 = int_to_ptr.vmem [resolvable:$true] %s283
          %286 = dma.hbm_to_vmem [thread:$0]  %s281, 128, %s284, %s273
        $region28: #{tpu_custom_call.1} parent=19 // pred_fallthru
          _
        // Predicated region
        $region29: #{tpu_custom_call.1} parent=19 // pred_check
          %p287 = pneg %p110
        $region30: #{tpu_custom_call.1} parent=19 // pred_check_branch
          %289 = sbr.rel (%p287) target = $region32
        $region31: #{tpu_custom_call.1} parent=19 // pred_region
          %s290 = sand.u32 %s26, 1
          %s291 = scalar_lea.sflag [#allocation10], %s290
          %s292 = sand.u32 %s100, 1
          %s293 = scalar_lea.vmem [#allocation9], %s292
          %s295 = ssub.s32 16, 16
          %296 = vsyncadd %s291, %s295
          %s297 = smul.addr %s33, 16
          %s298 = scalar_lea.hbm %s2, %s297
          %s300 = sshll.u32 %s293, 4
          %s301 = int_to_ptr.vmem [resolvable:$true] %s300
          %303 = dma.hbm_to_vmem [thread:$0]  %s298, 16, %s301, %s291
        $region32: #{tpu_custom_call.1} parent=19 // pred_fallthru
          _
        // Predicated region
        $region33: #{tpu_custom_call.1} parent=19 // pred_check
          %p304 = pneg %p157
        $region34: #{tpu_custom_call.1} parent=19 // pred_check_branch
          %306 = sbr.rel (%p304) target = $region36
        $region35: #{tpu_custom_call.1} parent=19 // pred_region
          %p307 = scmp.lt.s32.totalorder %s34, 2
          %s308 = scalar_select %p307, %s34, 2
          %s309 = scalar_lea.vmem %s4, %s308
        $region36: #{tpu_custom_call.1} parent=19 // pred_fallthru
          _
        // Predicated region
        $region37: #{tpu_custom_call.1} parent=19 // pred_check
          %p310 = pneg %p183
        $region38: #{tpu_custom_call.1} parent=19 // pred_check_branch
          %312 = sbr.rel (%p310) target = $region40
        $region39: #{tpu_custom_call.1} parent=19 // pred_region
          %s313 = sand.u32 %s26, 1
          %s314 = scalar_lea.sflag [#allocation10], %s313
          %s315 = sand.u32 %s173, 1
          %s316 = smul.addr %s315, 4
          %s317 = scalar_lea.vmem [#allocation11], %s316
          %s319 = ssub.s32 64, 64
          %320 = vsyncadd %s314, %s319
          %s321 = smul.addr %s34, 64
          %s322 = scalar_lea.hbm %s5, %s321
          %s324 = sshll.u32 %s317, 4
          %s325 = int_to_ptr.vmem [resolvable:$true] %s324
          %327 = dma.hbm_to_vmem [thread:$0]  %s322, 64, %s325, %s314
        $region40: #{tpu_custom_call.1} parent=19 // pred_fallthru
          _
        // Predicated region
        $region41: #{tpu_custom_call.1} parent=19 // pred_check
          %p328 = pneg %p209
        $region42: #{tpu_custom_call.1} parent=19 // pred_check_branch
          %330 = sbr.rel (%p328) target = $region44
        $region43: #{tpu_custom_call.1} parent=19 // pred_region
          %s331 = sand.u32 %s199, 1
          %s332 = scalar_lea.sflag [#allocation13], %s331
          %s333 = sand.u32 %s199, 1
          %s334 = smul.addr %s333, 4
          %s335 = scalar_lea.vmem [#allocation12], %s334
          %s337 = ssub.s32 64, 64
          %338 = vsyncadd %s332, %s337
          %s339 = smul.addr %s34, 64
          %s340 = scalar_lea.hbm %s6, %s339
          %s342 = sshll.u32 %s335, 4
          %s343 = int_to_ptr.vmem [resolvable:$true] %s342
          %345 = dma.hbm_to_vmem [thread:$0]  %s340, 64, %s343, %s332
        $region44: #{tpu_custom_call.1} parent=19 // pred_fallthru
          _
      $region20: #{tpu_custom_call.1} parent=5 // pred_fallthru
        _
      %p346 = scmp.le.s32.totalorder 1, %s26
      %p347 = scmp.lt.s32.totalorder %s26, 7
      %p348 = pnand %p346, %p347
      %p349 = pneg %p348
      // Predicated region
      $region45: #{tpu_custom_call.1} parent=5 // pred_check
        _
      $region46: #{tpu_custom_call.1} parent=5 // pred_check_branch
        %351 = sbr.rel (%p348) target = $region48
      $region47: #{tpu_custom_call.1} parent=5 // pred_region
        %s352 = ssub.s32 %s26, 1
        %s353 = sand.u32 %s77, 1
        %s354 = scalar_lea.sflag [#allocation7], %s353
        %s355 = sand.u32 %s77, 1
        %s356 = smul.addr %s355, 8
        %s357 = scalar_lea.vmem [#allocation6], %s356
        // Predicated region
        $region49: #{tpu_custom_call.1} parent=47 // pred_check
          %p358 = pneg %p90
        $region50: #{tpu_custom_call.1} parent=47 // pred_check_branch
          %360 = sbr.rel (%p358) target = $region52
        $region51: #{tpu_custom_call.1} parent=47 // pred_region
          %361 = dma.done %s354, 128
        $region52: #{tpu_custom_call.1} parent=47 // pred_fallthru
          _
        %s362 = sand.u32 %s31, 1
        %s363 = scalar_lea.sflag [#allocation10], %s362
        %s364 = sand.u32 %s103, 1
        %s365 = scalar_lea.vmem [#allocation9], %s364
        // Predicated region
        $region53: #{tpu_custom_call.1} parent=47 // pred_check
          %p366 = pneg %p116
        $region54: #{tpu_custom_call.1} parent=47 // pred_check_branch
          %368 = sbr.rel (%p366) target = $region56
        $region55: #{tpu_custom_call.1} parent=47 // pred_region
          %369 = dma.done %s363, 16
        $region56: #{tpu_custom_call.1} parent=47 // pred_fallthru
          _
        %s370 = sand.u32 %s31, 1
        %s371 = scalar_lea.sflag [#allocation10], %s370
        %s372 = sand.u32 %s176, 1
        %s373 = smul.addr %s372, 4
        %s374 = scalar_lea.vmem [#allocation11], %s373
        // Predicated region
        $region57: #{tpu_custom_call.1} parent=47 // pred_check
          %p375 = pneg %p189
        $region58: #{tpu_custom_call.1} parent=47 // pred_check_branch
          %377 = sbr.rel (%p375) target = $region60
        $region59: #{tpu_custom_call.1} parent=47 // pred_region
          %378 = dma.done %s371, 64
        $region60: #{tpu_custom_call.1} parent=47 // pred_fallthru
          _
        %s379 = sand.u32 %s202, 1
        %s380 = scalar_lea.sflag [#allocation13], %s379
        %s381 = sand.u32 %s202, 1
        %s382 = smul.addr %s381, 4
        %s383 = scalar_lea.vmem [#allocation12], %s382
        // Predicated region
        $region61: #{tpu_custom_call.1} parent=47 // pred_check
          %p384 = pneg %p215
        $region62: #{tpu_custom_call.1} parent=47 // pred_check_branch
          %386 = sbr.rel (%p384) target = $region64
        $region63: #{tpu_custom_call.1} parent=47 // pred_region
          %387 = dma.done %s380, 64
        $region64: #{tpu_custom_call.1} parent=47 // pred_fallthru
          _
        %p388 = scmp.lt.s32.totalorder %s35, 1
        %s389 = scalar_select %p388, %s35, 1
        %s390 = scalar_lea.vmem %s0, %s389
        %p391 = pneg %p64
        %p392 = pneg %p61
        %s393 = sand.u32 %s77, 1
        %s394 = scalar_lea.sflag [#allocation7], %s393
        %s395 = sand.u32 %s77, 1
        %s396 = smul.addr %s395, 8
        %s397 = scalar_lea.vmem [#allocation6], %s396
        %p398 = pneg %p90
        %p399 = pneg %p87
        %s400 = sand.u32 %s31, 1
        %s401 = scalar_lea.sflag [#allocation10], %s400
        %s402 = sand.u32 %s103, 1
        %s403 = scalar_lea.vmem [#allocation9], %s402
        %p404 = pneg %p116
        %p405 = pneg %p113
        %p406 = pneg %p137
        %p407 = pneg %p134
        %p408 = scmp.lt.s32.totalorder %s36, 2
        %s409 = scalar_select %p408, %s36, 2
        %s410 = scalar_lea.vmem %s4, %s409
        %p411 = pneg %p163
        %p412 = pneg %p160
        %s413 = sand.u32 %s31, 1
        %s414 = scalar_lea.sflag [#allocation10], %s413
        %s415 = sand.u32 %s176, 1
        %s416 = smul.addr %s415, 4
        %s417 = scalar_lea.vmem [#allocation11], %s416
        %p418 = pneg %p189
        %p419 = pneg %p186
        %s420 = sand.u32 %s202, 1
        %s421 = scalar_lea.sflag [#allocation13], %s420
        %s422 = sand.u32 %s202, 1
        %s423 = smul.addr %s422, 4
        %s424 = scalar_lea.vmem [#allocation12], %s423
        %p425 = pneg %p215
        %p426 = pneg %p212
        %p427 = pneg %p241
        %p428 = pneg %p238
        %s429 = sand.u32 %s228, 1
        %s430 = scalar_lea.sflag [#allocation8], %s429
        %s431 = sand.u32 %s228, 1
        %s432 = smul.addr %s431, 4
        %s433 = scalar_lea.vmem [#allocation14], %s432
        %p434 = scmp.lt.s32.totalorder %s35, 1
        %s435 = scalar_select %p434, %s35, 1
        %s436 = scalar_lea.vmem %s0, %s435
        %p437 = scmp.lt.s32.totalorder %s36, 2
        %s438 = scalar_select %p437, %s36, 2
        %s439 = scalar_lea.vmem %s4, %s438
        %v440 = vld [vmem:[%s436] sm:$0x1]
        %v441 = vld [vmem:[%s365] sm:$0x1]
        %s442 = sld [smem:[#allocation5]]
        %v443 = vlaneseq
        %v444 = vshrl.u32 %v443, 7
        %v445 = vcvt.s32.f32 %v444
        %v446 = vmul.f32 %v445, 2.0
        %v447 = vadd.f32 %v446, -3.0
        %v448 = vmul.f32 %v447, %v447
        %p449 = scmp.eq.s32.totalorder %s36, 0
        // Predicated region
        $region65: #{tpu_custom_call.1} parent=47 // pred_check
          %p450 = pneg %p449
        $region66: #{tpu_custom_call.1} parent=47 // pred_check_branch
          %452 = sbr.rel (%p450) target = $region68
        $region67: #{tpu_custom_call.1} parent=47 // pred_region
          %vm453 = vcmask 60416
          %454 = vst.msk [vmem:[%s433] sm:$0xf] %vm453, 0.25
          %v455 = vld [vmem:[%s357] sm:$0xff]
          %v456 = vmul.f32 %v455, %v455
          %vm457 = vcmask 64512
          %458 = vst.msk [vmem:[#allocation2] sm:$0xff] %vm457, %v456
          %v459 = vadd.f32 %v447, -3.0
          %v461 = vlaneseq
          %v462 = vshrl.u32 %v461, 7
          %v463 = vsub.s32 0, %v462
          %v464 = vrot.slane %v441, %v463
          %v466 = vmul.f32 %v464, %v459
          %467 = vst.msk [vmem:[#allocation3] sm:$0xf] %vm453, %v466
          %v468 = vmul.f32 %v441, 0.5
          %v469 = vsub.f32 %v447, -3.0
          %v471 = vlaneseq
          %v472 = vshrl.u32 %v471, 7
          %v473 = vsub.s32 0, %v472
          %v474 = vrot.slane %v468, %v473
          %v476 = vmul.f32 %v474, %v469
          %477 = vst.msk [vmem:[#allocation4] sm:$0xf] %vm453, %v476
        $region68: #{tpu_custom_call.1} parent=47 // pred_fallthru
          _
        %v478 = vld [vmem:[%s433] sm:$0xf]
        %v479 = vld [vmem:[%s374] sm:$0xf]
        %v480 = vld [vmem:[%s383] sm:$0xf]
        %v481 = vld [vmem:[%s439] sm:$0x1]
        %v482 = vmul.f32 %v478, %v447
        %vm483 = vcmask 60416
        %v484 = vsel %vm483, %v482, 0.0
        %v485 = vrot.slane %v484, 4
        %v486 = vadd.f32 %v484, %v485
        %v487 = vrot.slane %v486, 2
        %v488 = vadd.f32 %v486, %v487
        %v489 = vrot.slane %v488, 1
        %v490 = vadd.f32 %v488, %v489
        %v491 = vmul.f32 %v478, %v448
        %v492 = vsel %vm483, %v491, 0.0
        %v493 = vrot.slane %v492, 4
        %v494 = vadd.f32 %v492, %v493
        %v495 = vrot.slane %v494, 2
        %v496 = vadd.f32 %v494, %v495
        %v497 = vrot.slane %v496, 1
        %v498 = vadd.f32 %v496, %v497
        %v499 = vmul.f32 %v490, %v490
        %v500 = vsub.f32 %v498, %v499
        %v501 = vld [vmem:[%s357] sm:$0xff]
        %vm502 = vcmask 64512
        %v504 = vsel %vm502, %v490, 0
        %506 = vmatprep.subr.mxu0 0.0
        %507 = vmatpush1.msra.mxu0 0.0
        %508 = vmatprep.subr.mxu0 0.0
        %509 = vmatpush1.msra.mxu0 0.0
        %510 = vmatprep.subr.mxu0 0.0
        %511 = vmatpush1.msra.mxu0 0.0
        %512 = vmatprep.subr.mxu0 0.0
        %513 = vmatpush1.msra.mxu0 0.0
        %514 = vmatprep.subr.mxu0 0.0
        %515 = vmatpush1.msra.mxu0 0.0
        %516 = vmatprep.subr.mxu0 0.0
        %517 = vmatpush1.msra.mxu0 0.0
        %518 = vmatprep.subr.mxu0 0.0
        %519 = vmatpush1.msra.mxu0 0.0
        %520 = vmatprep.subr.mxu0 0.0
        %521 = vmatpush1.msra.mxu0 0.0
        %522 = vmatprep.subr.mxu0 0.0
        %523 = vmatpush1.msra.mxu0 0.0
        %524 = vmatprep.subr.mxu0 0.0
        %525 = vmatpush1.msra.mxu0 0.0
        %526 = vmatprep.subr.mxu0 0.0
        %527 = vmatpush1.msra.mxu0 0.0
        %528 = vmatprep.subr.mxu0 0.0
        %529 = vmatpush1.msra.mxu0 0.0
        %530 = vmatprep.subr.mxu0 0.0
        %531 = vmatpush1.msra.mxu0 0.0
        %532 = vmatprep.subr.mxu0 0.0
        %533 = vmatpush1.msra.mxu0 0.0
        %534 = vmatprep.subr.mxu0 0.0
        %535 = vmatpush1.msra.mxu0 0.0
        %536 = vmatprep.subr.mxu0 0.0
        %537 = vmatpush1.msra.mxu0 %v501
        %538 = vmatprep.subr.mxu0 0.0
        %539 = vmatpush2.msra.mxu0 0.0
        %540 = vmatprep.subr.mxu0 0.0
        %541 = vmatpush2.msra.mxu0 0.0
        %542 = vmatprep.subr.mxu0 0.0
        %543 = vmatpush2.msra.mxu0 0.0
        %544 = vmatprep.subr.mxu0 0.0
        %545 = vmatpush2.msra.mxu0 0.0
        %546 = vmatprep.subr.mxu0 0.0
        %547 = vmatpush2.msra.mxu0 0.0
        %548 = vmatprep.subr.mxu0 0.0
        %549 = vmatpush2.msra.mxu0 0.0
        %550 = vmatprep.subr.mxu0 0.0
        %551 = vmatpush2.msra.mxu0 0.0
        %552 = vmatprep.subr.mxu0 0.0
        %553 = vmatpush2.msra.mxu0 0.0
        %554 = vmatprep.subr.mxu0 0.0
        %555 = vmatpush2.msra.mxu0 0.0
        %556 = vmatprep.subr.mxu0 0.0
        %557 = vmatpush2.msra.mxu0 0.0
        %558 = vmatprep.subr.mxu0 0.0
        %559 = vmatpush2.msra.mxu0 0.0
        %560 = vmatprep.subr.mxu0 0.0
        %561 = vmatpush2.msra.mxu0 0.0
        %562 = vmatprep.subr.mxu0 0.0
        %563 = vmatpush2.msra.mxu0 0.0
        %564 = vmatprep.subr.mxu0 0.0
        %565 = vmatpush2.msra.mxu0 0.0
        %566 = vmatprep.subr.mxu0 0.0
        %567 = vmatpush2.msra.mxu0 0.0
        %568 = vmatprep.subr.mxu0 0.0
        %569 = vmatpush2.msra.mxu0 0.0
        %570 = vmatprep.mubr.f32.mxu0 0.0
        %571 = vmatmul.mubr.f32.gmra.mxu0 %v504
        %v572 = vpop.f32.mrf.mxu0
        %v573 = vadd.f32 0.0, %v572
        %v574 = vpop.f32.mrf.mxu0
        %575 = vdwg.mxu0
        %v576 = vmul.f32 %v490, %v441
        %v577 = vsub.f32 %v573, %v576
        %v578 = vld [vmem:[#allocation2] sm:$0xff]
        %v579 = vstv %s442
        %v581 = vsel %vm502, %v500, 0
        %583 = vmatprep.subr.mxu0 0.0
        %584 = vmatpush1.msra.mxu0 0.0
        %585 = vmatprep.subr.mxu0 0.0
        %586 = vmatpush1.msra.mxu0 0.0
        %587 = vmatprep.subr.mxu0 0.0
        %588 = vmatpush1.msra.mxu0 0.0
        %589 = vmatprep.subr.mxu0 0.0
        %590 = vmatpush1.msra.mxu0 0.0
        %591 = vmatprep.subr.mxu0 0.0
        %592 = vmatpush1.msra.mxu0 0.0
        %593 = vmatprep.subr.mxu0 0.0
        %594 = vmatpush1.msra.mxu0 0.0
        %595 = vmatprep.subr.mxu0 0.0
        %596 = vmatpush1.msra.mxu0 0.0
        %597 = vmatprep.subr.mxu0 0.0
        %598 = vmatpush1.msra.mxu0 0.0
        %599 = vmatprep.subr.mxu0 0.0
        %600 = vmatpush1.msra.mxu0 0.0
        %601 = vmatprep.subr.mxu0 0.0
        %602 = vmatpush1.msra.mxu0 0.0
        %603 = vmatprep.subr.mxu0 0.0
        %604 = vmatpush1.msra.mxu0 0.0
        %605 = vmatprep.subr.mxu0 0.0
        %606 = vmatpush1.msra.mxu0 0.0
        %607 = vmatprep.subr.mxu0 0.0
        %608 = vmatpush1.msra.mxu0 0.0
        %609 = vmatprep.subr.mxu0 0.0
        %610 = vmatpush1.msra.mxu0 0.0
        %611 = vmatprep.subr.mxu0 0.0
        %612 = vmatpush1.msra.mxu0 0.0
        %613 = vmatprep.subr.mxu0 0.0
        %614 = vmatpush1.msra.mxu0 %v578
        %615 = vmatprep.subr.mxu0 0.0
        %616 = vmatpush2.msra.mxu0 0.0
        %617 = vmatprep.subr.mxu0 0.0
        %618 = vmatpush2.msra.mxu0 0.0
        %619 = vmatprep.subr.mxu0 0.0
        %620 = vmatpush2.msra.mxu0 0.0
        %621 = vmatprep.subr.mxu0 0.0
        %622 = vmatpush2.msra.mxu0 0.0
        %623 = vmatprep.subr.mxu0 0.0
        %624 = vmatpush2.msra.mxu0 0.0
        %625 = vmatprep.subr.mxu0 0.0
        %626 = vmatpush2.msra.mxu0 0.0
        %627 = vmatprep.subr.mxu0 0.0
        %628 = vmatpush2.msra.mxu0 0.0
        %629 = vmatprep.subr.mxu0 0.0
        %630 = vmatpush2.msra.mxu0 0.0
        %631 = vmatprep.subr.mxu0 0.0
        %632 = vmatpush2.msra.mxu0 0.0
        %633 = vmatprep.subr.mxu0 0.0
        %634 = vmatpush2.msra.mxu0 0.0
        %635 = vmatprep.subr.mxu0 0.0
        %636 = vmatpush2.msra.mxu0 0.0
        %637 = vmatprep.subr.mxu0 0.0
        %638 = vmatpush2.msra.mxu0 0.0
        %639 = vmatprep.subr.mxu0 0.0
        %640 = vmatpush2.msra.mxu0 0.0
        %641 = vmatprep.subr.mxu0 0.0
        %642 = vmatpush2.msra.mxu0 0.0
        %643 = vmatprep.subr.mxu0 0.0
        %644 = vmatpush2.msra.mxu0 0.0
        %645 = vmatprep.subr.mxu0 0.0
        %646 = vmatpush2.msra.mxu0 0.0
        %647 = vmatprep.mubr.f32.mxu0 0.0
        %648 = vmatmul.mubr.f32.gmra.mxu0 %v581
        %v649 = vpop.f32.mrf.mxu0
        %v650 = vadd.f32 %v579, %v649
        %v651 = vpop.f32.mrf.mxu0
        %652 = vdwg.mxu0
        %v653 = vmul.f32 %v441, %v441
        %v654 = vmul.f32 %v500, %v653
        %v655 = vsub.f32 %v650, %v654
        %v656 = vrcp.pop %v655
        %v657 = vmul.f32 1.0, %v656
        %v658 = vsub.f32 %v440, %v577
        %v659 = vmul.f32 %v658, 2.0
        %v660 = vld [vmem:[#allocation3] sm:$0xf]
        %v662 = vlaneseq
        %v663 = vshrl.u32 %v662, 7
        %v664 = vsub.s32 0, %v663
        %v665 = vrot.slane %v659, %v664
        %v667 = vsub.f32 %v665, %v660
        %v668 = vld [vmem:[#allocation4] sm:$0xf]
        %v669 = vmul.f32 %v667, %v668
        %v670 = vlaneseq
        %v671 = vshrl.u32 %v670, 7
        %v672 = vsub.s32 0, %v671
        %v673 = vrot.slane %v657, %v672
        %v674 = vmul.f32 %v669, %v673
        %v675 = vmul.f32 %v674, %v479
        %v676 = vadd.f32 %v675, %v480
        %v677 = vsel %vm483, %v676, -inf
        %v678 = vrot.slane %v677, 4
        %v679 = vmax.f32 %v677, %v678
        %v680 = vrot.slane %v679, 2
        %v681 = vmax.f32 %v679, %v680
        %v682 = vrot.slane %v681, 1
        %v683 = vmax.f32 %v681, %v682
        %v684 = vsub.f32 %v676, %v683
        %v685 = vmul.f32 %v684, 1.442695
        %v686 = vpow.pop %v685
        %v687 = vsel %vm483, %v686, 0.0
        %v688 = vrot.slane %v687, 4
        %v689 = vadd.f32 %v687, %v688
        %v690 = vrot.slane %v689, 2
        %v691 = vadd.f32 %v689, %v690
        %v692 = vrot.slane %v691, 1
        %v693 = vadd.f32 %v691, %v692
        %v694 = vrcp.pop %v693
        %v695 = vmul.f32 1.0, %v694
        %v696 = vmul.f32 %v686, %v695
        %v697 = vsub.f32 1.0, %v481
        %v699 = vlaneseq
        %v700 = vshrl.u32 %v699, 7
        %v701 = vsub.s32 0, %v700
        %v702 = vrot.slane %v697, %v701
        %v704 = vmul.f32 %v696, %v702
        %v706 = vlaneseq
        %v707 = vshrl.u32 %v706, 7
        %v708 = vsub.s32 0, %v707
        %v709 = vrot.slane %v481, %v708
        %v711 = vmul.f32 %v478, %v709
        %v712 = vadd.f32 %v704, %v711
        %713 = vst.msk [vmem:[%s433] sm:$0xf] %vm483, %v712
        %s714 = sand.u32 %s228, 1
        %s715 = scalar_lea.sflag [#allocation8], %s714
        %s716 = sand.u32 %s228, 1
        %s717 = smul.addr %s716, 4
        %s718 = scalar_lea.vmem [#allocation14], %s717
        // Predicated region
        $region69: #{tpu_custom_call.1} parent=47 // pred_check
          %p719 = pneg %p238
        $region70: #{tpu_custom_call.1} parent=47 // pred_check_branch
          %721 = sbr.rel (%p719) target = $region72
        $region71: #{tpu_custom_call.1} parent=47 // pred_region
          %s723 = ssub.s32 64, 64
          %724 = vsyncadd %s715, %s723
          %s725 = smul.addr %s35, 64
          %s726 = scalar_lea.hbm %s7, %s725
          %s728 = sshll.u32 %s718, 4
          %s729 = int_to_ptr.vmem [resolvable:$true] %s728
          %731 = dma.vmem_to_hbm [thread:$0]  %s729, 64, %s726, %s715
        $region72: #{tpu_custom_call.1} parent=47 // pred_fallthru
          _
      $region48: #{tpu_custom_call.1} parent=5 // pred_fallthru
        _
      %p732 = scmp.le.s32.totalorder 2, %s26
      // Predicated region
      $region73: #{tpu_custom_call.1} parent=5 // pred_check
        %p733 = pneg %p732
      $region74: #{tpu_custom_call.1} parent=5 // pred_check_branch
        %735 = sbr.rel (%p733) target = $region76
      $region75: #{tpu_custom_call.1} parent=5 // pred_region
        %s736 = ssub.s32 %s26, 2
        // Predicated region
        $region77: #{tpu_custom_call.1} parent=75 // pred_check
          %p737 = pneg %p244
        $region78: #{tpu_custom_call.1} parent=75 // pred_check_branch
          %739 = sbr.rel (%p737) target = $region80
        $region79: #{tpu_custom_call.1} parent=75 // pred_region
          %s740 = sand.u32 %s229, 1
          %s741 = scalar_lea.sflag [#allocation8], %s740
          %s742 = sand.u32 %s229, 1
          %s743 = smul.addr %s742, 4
          %s744 = scalar_lea.vmem [#allocation14], %s743
          %745 = dma.done %s741, 64
        $region80: #{tpu_custom_call.1} parent=75 // pred_fallthru
          _
      $region76: #{tpu_custom_call.1} parent=5 // pred_fallthru
        _
    $region6: #{tpu_custom_call.1} parent=1 // loop_footer
      %s30 = sadd.s32 1, %s26
    $region7: #{tpu_custom_call.1} parent=1 // loop_footer_branch
      %25 = sbr.rel target = $region3
    $region8: #{tpu_custom_call.1} parent=1 // loop_exit
      _
    %746 = vsyncpa [#allocation7], 1
    %s747 = scalar_lea.sflag [#allocation7], 1
    %748 = vsyncpa %s747, 1
    %749 = vsyncpa [#allocation10], 1
    %s750 = scalar_lea.sflag [#allocation10], 1
    %751 = vsyncpa %s750, 1
    %752 = vsyncpa [#allocation13], 1
    %s753 = scalar_lea.sflag [#allocation13], 1
    %754 = vsyncpa %s753, 1
    %755 = vsyncpa [#allocation8], 1
    %s756 = scalar_lea.sflag [#allocation8], 1
    %757 = vsyncpa %s756, 1

</llo_original>
